<compile_context>
chip_gen: v7x
topology: tpu7x:2x2x1
jax: 0.10.0
libtpu: 0.0.40
codegen_flags: <defaults>
</compile_context>

<pallas_src>
import math

import numpy as np
import jax
import jax.numpy as jnp
from jax.experimental import pallas as pl
from jax.experimental.pallas import tpu as pltpu

WINDOW = 8
EMBED_DIM = 128
DEPTHS = (2, 2, 18, 2)
NUM_HEADS = (4, 8, 16, 32)
MLP_RATIO = 4
CPB_HIDDEN = 512


def _round_up(x, m):
    return ((x + m - 1) // m) * m


def _pick_divisor(n, cap=8):
    for c in range(min(n, cap), 0, -1):
        if n % c == 0:
            return c
    return 1


def _choose_m_tiling(M, cap=512):
    """Pick (TM, Mp) with Mp % TM == 0.  Mp is (almost always) just M rounded up
    to 8, so large activations are never padded/copied in the hot path merely to
    make the M tile divide."""
    Mp = _round_up(M, 8)
    if Mp <= cap:
        return Mp, Mp
    for tm in range(cap, 63, -8):          # largest multiple-of-8 divisor <= cap
        if Mp % tm == 0:
            return tm, Mp
    return 256, _round_up(M, 256)          # rare fallback (pads)


# ----------------------------------------------------------------------------
# In-kernel math helpers
# ----------------------------------------------------------------------------
def _erf(x):
    # Abramowitz & Stegun 7.1.26, |err| < 1.5e-7 (~f32 eps). exp -> EUP.
    p = 0.3275911
    a1, a2, a3, a4, a5 = 0.254829592, -0.284496736, 1.421413741, -1.453152027, 1.061405429
    sign = jnp.where(x >= 0.0, 1.0, -1.0)
    ax = jnp.abs(x)
    t = 1.0 / (1.0 + p * ax)
    poly = ((((a5 * t + a4) * t + a3) * t + a2) * t + a1) * t
    return sign * (1.0 - poly * jnp.exp(-ax * ax))


def _gelu_exact(x):
    # PyTorch nn.GELU default (erf based).
    return 0.5 * x * (1.0 + _erf(x * 0.7071067811865476))


# ----------------------------------------------------------------------------
# Pallas kernels
# ----------------------------------------------------------------------------
def _make_matmul_kernel(act):
    def kernel(a_ref, b_ref, bias_ref, o_ref):
        a = a_ref[...].astype(jnp.bfloat16)      # no-op when the wrapper fed bf16
        acc = jnp.dot(a, b_ref[...], preferred_element_type=jnp.float32)
        acc = acc + bias_ref[...]
        if act == "gelu":
            acc = _gelu_exact(acc)
        elif act == "relu":
            acc = jnp.maximum(acc, 0.0)
        o_ref[...] = acc.astype(o_ref.dtype)
    return kernel


def pallas_linear(x, w, b=None, act=None, out_dtype=jnp.float32):
    """y = act(x @ w + b). w stored (in_features, out_features), used as bf16."""
    xs = x.shape
    K = xs[-1]
    N = w.shape[1]
    M = math.prod(xs[:-1])
    a = x.reshape(M, K)

    Kp = _round_up(K, 128)
    # N tiling: prefer >=256-wide tiles (full MXU width on v6e/v7x); use full N
    # when it is small enough to fit in one tile.
    if N <= 512:
        TN = _round_up(N, 128)
    elif N % 512 == 0:
        TN = 512
    elif N % 256 == 0:
        TN = 256
    else:
        TN = 128
    Np = _round_up(N, TN)
    TM, Mp = _choose_m_tiling(M, cap=512)

    # v7x: make sure at least one "parallel" grid axis has >=2 steps so both
    # TensorCores get work.
    if Mp // TM == 1 and Np // TN == 1:
        if Np % 256 == 0:
            TN = Np // 2
        elif Mp % 256 == 0:
            TM = Mp // 2

    if (Mp, Kp) != (M, K):
        a = jnp.pad(a, ((0, Mp - M), (0, Kp - K)))
    w = w.astype(jnp.bfloat16)
    if w.shape != (Kp, Np):
        w = jnp.pad(w, ((0, Kp - w.shape[0]), (0, Np - w.shape[1])))
    if b is None:
        bias = jnp.zeros((1, Np), jnp.float32)
    else:
        bias = b.astype(jnp.float32).reshape(1, N)
        if Np != N:
            bias = jnp.pad(bias, ((0, 0), (0, Np - N)))

    out = pl.pallas_call(
        _make_matmul_kernel(act),
        out_shape=jax.ShapeDtypeStruct((Mp, Np), out_dtype),
        grid_spec=pltpu.PrefetchScalarGridSpec(
            num_scalar_prefetch=0,
            grid=(Mp // TM, Np // TN),
            in_specs=[
                pl.BlockSpec((TM, Kp), lambda i, j: (i, 0)),
                pl.BlockSpec((Kp, TN), lambda i, j: (0, j)),
                pl.BlockSpec((1, TN), lambda i, j: (0, j)),
            ],
            out_specs=pl.BlockSpec((TM, TN), lambda i, j: (i, j)),
        ),
        compiler_params=pltpu.CompilerParams(
            dimension_semantics=("parallel", "parallel")),
    )(a, w, bias)
    return out[:M, :N].reshape(xs[:-1] + (N,))


def _make_matmul_ln_kernel(nk, has_residual):
    def kernel(*refs):
        if has_residual:
            a_ref, b_ref, bias_ref, g_ref, be_ref, r_ref, o_ref, acc_ref = refs
        else:
            a_ref, b_ref, bias_ref, g_ref, be_ref, o_ref, acc_ref = refs
            r_ref = None
        k = pl.program_id(1)

        @pl.when(k == 0)
        def _():
            acc_ref[...] = jnp.zeros_like(acc_ref)

        acc_ref[...] += jnp.dot(a_ref[...].astype(jnp.bfloat16), b_ref[...],
                                preferred_element_type=jnp.float32)

        @pl.when(k == nk - 1)
        def _():
            y = acc_ref[...] + bias_ref[...]
            mean = jnp.mean(y, axis=-1, keepdims=True)
            var = jnp.mean(jnp.square(y - mean), axis=-1, keepdims=True)
            y = (y - mean) * jax.lax.rsqrt(var + 1e-5)
            y = y * g_ref[...] + be_ref[...]
            if has_residual:
                y = y + r_ref[...]
            o_ref[...] = y.astype(o_ref.dtype)
    return kernel


def pallas_linear_ln(x, w, b, ln_w, ln_b, residual=None):
    """y = LayerNorm(x @ w + b) * ln_w + ln_b  (+ residual).  N must be 128-aligned.
    Output stays f32 (this is the residual / post-LN stream)."""
    xs = x.shape
    K = xs[-1]
    N = w.shape[1]
    assert N % 128 == 0
    M = math.prod(xs[:-1])
    a = x.reshape(M, K)

    Kp = _round_up(K, 128)
    TK = 512 if (Kp % 512 == 0) else Kp
    nk = Kp // TK
    TM, Mp = _choose_m_tiling(M, cap=256)
    if Mp // TM == 1 and Mp % 256 == 0:
        TM = Mp // 2                       # >=2 parallel steps for v7x's 2 TCs

    if (Mp, Kp) != (M, K):
        a = jnp.pad(a, ((0, Mp - M), (0, Kp - K)))
    w = w.astype(jnp.bfloat16)
    if w.shape[0] != Kp:
        w = jnp.pad(w, ((0, Kp - w.shape[0]), (0, 0)))
    if b is None:
        bias = jnp.zeros((1, N), jnp.float32)
    else:
        bias = b.astype(jnp.float32).reshape(1, N)
    gw = ln_w.astype(jnp.float32).reshape(1, N)
    gb = ln_b.astype(jnp.float32).reshape(1, N)

    in_specs = [
        pl.BlockSpec((TM, TK), lambda i, k: (i, k)),
        pl.BlockSpec((TK, N), lambda i, k: (k, 0)),
        pl.BlockSpec((1, N), lambda i, k: (0, 0)),
        pl.BlockSpec((1, N), lambda i, k: (0, 0)),
        pl.BlockSpec((1, N), lambda i, k: (0, 0)),
    ]
    args = [a, w, bias, gw, gb]
    if residual is not None:
        r = residual.reshape(M, N).astype(jnp.float32)
        if Mp != M:
            r = jnp.pad(r, ((0, Mp - M), (0, 0)))
        in_specs.append(pl.BlockSpec((TM, N), lambda i, k: (i, 0)))
        args.append(r)

    out = pl.pallas_call(
        _make_matmul_ln_kernel(nk, residual is not None),
        out_shape=jax.ShapeDtypeStruct((Mp, N), jnp.float32),
        grid_spec=pltpu.PrefetchScalarGridSpec(
            num_scalar_prefetch=0,
            grid=(Mp // TM, nk),
            in_specs=in_specs,
            out_specs=pl.BlockSpec((TM, N), lambda i, k: (i, 0)),
            scratch_shapes=[pltpu.VMEM((TM, N), jnp.float32)],
        ),
        compiler_params=pltpu.CompilerParams(
            dimension_semantics=("parallel", "arbitrary")),
    )(*args)
    return out[:M, :N].reshape(xs[:-1] + (N,))


def _make_attn_kernel(nh, hd, has_mask):
    C = nh * hd

    def kernel(*refs):
        if has_mask:
            qkv_ref, scale_ref, bias_ref, mask_ref, o_ref = refs
            m = mask_ref[...]                      # (gw, T, T) loaded once
        else:
            qkv_ref, scale_ref, bias_ref, o_ref = refs
        # Heads are processed in groups of 4 (= 128 output lanes) so every
        # o_ref store is an unmasked, lane-dense, 128-aligned store while the
        # live register footprint stays bounded.
        # TODO(synk): hoisting the whole qkv block load out of the head loop
        # (per review) exceeds vreg capacity for C>=128 blocks, so per-head ref
        # slices are kept; revisit with a head-batched layout if profiled hot.
        group = 4 if nh % 4 == 0 else 1
        for g0 in range(0, nh, group):
            outs = []
            for h in range(g0, g0 + group):
                q = qkv_ref[:, :, h * hd:(h + 1) * hd].astype(jnp.float32)
                k = qkv_ref[:, :, C + h * hd:C + (h + 1) * hd].astype(jnp.float32)
                v = qkv_ref[:, :, 2 * C + h * hd:2 * C + (h + 1) * hd]   # bf16
                # Cosine attention (F.normalize, eps=1e-12) in f32; rsqrt, and
                # the per-head logit scale folded into q before the MXU matmul.
                q_inv = jax.lax.rsqrt(
                    jnp.maximum(jnp.sum(q * q, axis=-1, keepdims=True), 1e-24))
                k_inv = jax.lax.rsqrt(
                    jnp.maximum(jnp.sum(k * k, axis=-1, keepdims=True), 1e-24))
                qn = (q * (q_inv * scale_ref[h])).astype(jnp.bfloat16)
                kn = (k * k_inv).astype(jnp.bfloat16)
                s = jnp.einsum("gtd,gsd->gts", qn, kn,
                               preferred_element_type=jnp.float32)
                s = s + bias_ref[h]                # (T,T) relative-position bias
                if has_mask:
                    s = s + m
                s = s - jnp.max(s, axis=-1, keepdims=True)
                p = jnp.exp(s)
                p = p * pl.reciprocal(jnp.sum(p, axis=-1, keepdims=True), approx=True)
                o_h = jnp.einsum("gts,gsd->gtd", p.astype(jnp.bfloat16), v,
                                 preferred_element_type=jnp.float32)
                outs.append(o_h.astype(o_ref.dtype))
            o_ref[:, :, g0 * hd:(g0 + group) * hd] = jnp.concatenate(outs, axis=-1)
    return kernel


def _attn_gw(n_units, T, C, has_mask):
    # Cap the window batch so the double-buffered bf16 qkv/out (+f32 mask)
    # blocks stay well within v5e's 16 MiB / v7x's 32 MiB default scoped VMEM.
    per_win = T * 3 * C * 2 + T * C * 2 + (T * T * 4 if has_mask else 0)
    cap = 8 if has_mask else 16
    cap = max(1, min(cap, (6 << 20) // per_win))
    return _pick_divisor(n_units, cap)


def pallas_window_attention(qkv, scale, bias, mask, nh):
    """qkv: (G, T, 3C) bf16 -> (G, T, C) bf16.  mask: None or (nW, T, T), G = B*nW."""
    G, T, C3 = qkv.shape
    C = C3 // 3
    hd = C // nh
    has_mask = mask is not None
    if has_mask:
        nW = mask.shape[0]
        gw = _attn_gw(nW, T, C, True)      # divides nW (mask <-> window alignment)
    else:
        nW = 1
        gw = _attn_gw(G, T, C, False)
    if G // gw == 1 and gw % 2 == 0:
        gw //= 2                           # >=2 parallel grid steps for v7x
    nblk = (nW // gw) if has_mask else 1

    in_specs = [
        pl.BlockSpec((gw, T, C3), lambda g: (g, 0, 0)),
        pl.BlockSpec(memory_space=pltpu.MemorySpace.SMEM),     # (nh,) logit scales
        pl.BlockSpec((nh, T, T), lambda g: (0, 0, 0)),
    ]
    args = [qkv, scale, bias]
    if has_mask:
        in_specs.append(pl.BlockSpec((gw, T, T), lambda g: (g % nblk, 0, 0)))
        args.append(mask)

    return pl.pallas_call(
        _make_attn_kernel(nh, hd, has_mask),
        out_shape=jax.ShapeDtypeStruct((G, T, C), jnp.bfloat16),
        grid_spec=pltpu.PrefetchScalarGridSpec(
            num_scalar_prefetch=0,
            grid=(G // gw,),
            in_specs=in_specs,
            out_specs=pl.BlockSpec((gw, T, C), lambda g: (g, 0, 0)),
        ),
        compiler_params=pltpu.CompilerParams(dimension_semantics=("parallel",)),
    )(*args)


# ----------------------------------------------------------------------------
# Swin-V2 static tables (numpy, shapes are static)
# ----------------------------------------------------------------------------
def _relative_coords_table(ws):
    r = np.arange(-(ws - 1), ws, dtype=np.float32)
    t = np.stack(np.meshgrid(r, r, indexing="ij"), axis=-1)    # (2ws-1, 2ws-1, 2)
    t = t / (ws - 1) * 8.0
    t = np.sign(t) * np.log2(np.abs(t) + 1.0) / 3.0
    return t.reshape(-1, 2).astype(np.float32)                 # (225, 2)


def _relative_position_index(ws):
    coords = np.stack(np.meshgrid(np.arange(ws), np.arange(ws), indexing="ij"))
    flat = coords.reshape(2, -1)
    rel = flat[:, :, None] - flat[:, None, :]
    rel = rel.transpose(1, 2, 0).astype(np.int64)
    rel[..., 0] += ws - 1
    rel[..., 1] += ws - 1
    rel[..., 0] *= 2 * ws - 1
    return rel.sum(-1).reshape(-1)                             # (T*T,)


def _shift_attn_mask(pH, pW, ws, sh, sw):
    m = np.zeros((pH, pW), np.float32)
    h_slices = ((0, pH - ws), (pH - ws, pH - sh), (pH - sh, pH))
    w_slices = ((0, pW - ws), (pW - ws, pW - sw), (pW - sw, pW))
    cnt = 0
    for hlo, hhi in h_slices:
        for wlo, whi in w_slices:
            m[hlo:hhi, wlo:whi] = cnt
            cnt += 1
    m = m.reshape(pH // ws, ws, pW // ws, ws).transpose(0, 2, 1, 3).reshape(-1, ws * ws)
    diff = m[:, None, :] - m[:, :, None]
    return np.where(diff != 0, -100.0, 0.0).astype(np.float32)  # (nW, T, T)


# ----------------------------------------------------------------------------
# Model forward (glue in plain JAX, compute in Pallas)
# ----------------------------------------------------------------------------
def shifted_window_attention_v2(x, p, nh, shift):
    """Returns x + norm1(proj(window_attention(x))) in (B, H, W, C) f32."""
    B, H, W, C = x.shape
    ws = WINDOW
    xb = x.astype(jnp.bfloat16)            # window glue + qkv matmul run in bf16
    pad_b = (-H) % ws
    pad_r = (-W) % ws
    if pad_b or pad_r:
        xb = jnp.pad(xb, ((0, 0), (0, pad_b), (0, pad_r), (0, 0)))
    pH, pW = H + pad_b, W + pad_r
    sh = 0 if ws >= pH else shift
    sw = 0 if ws >= pW else shift
    if sh or sw:
        xb = jnp.roll(xb, shift=(-sh, -sw), axis=(1, 2))
    nWh, nWw = pH // ws, pW // ws
    nW = nWh * nWw
    T = ws * ws
    xw = xb.reshape(B, nWh, ws, nWw, ws, C).transpose(0, 1, 3, 2, 4, 5).reshape(B * nW, T, C)

    qkv = pallas_linear(xw, p["qkv_w"], p["qkv_b"], out_dtype=jnp.bfloat16)   # (G,T,3C)

    mask = jnp.asarray(_shift_attn_mask(pH, pW, ws, sh, sw)) if (sh or sw) else None
    out = pallas_window_attention(qkv, p["attn_scale"], p["attn_bias"], mask, nh)  # bf16

    # Window reverse / roll-back / crop on the bf16 tensor (half the glue bytes);
    # the projection + post-norm (norm1) + residual add are fused in one kernel
    # (LN and the linear are per-token, so doing them after the un-windowing is
    # exactly equivalent).
    out = out.reshape(B, nWh, nWw, ws, ws, C).transpose(0, 1, 3, 2, 4, 5).reshape(B, pH, pW, C)
    if sh or sw:
        out = jnp.roll(out, shift=(sh, sw), axis=(1, 2))
    if pad_b or pad_r:
        out = out[:, :H, :W, :]
    return pallas_linear_ln(out, p["proj_w"], p["proj_b"], p["norm1_w"], p["norm1_b"],
                            residual=x)


def swin_block_v2(x, p, nh, shift):
    # V2: post-norm residual blocks. Stochastic depth / dropout = identity (inference).
    x = shifted_window_attention_v2(x, p, nh, shift)        # residual fused inside
    h = pallas_linear(x, p["fc1_w"], p["fc1_b"], act="gelu", out_dtype=jnp.bfloat16)
    x = pallas_linear_ln(h, p["fc2_w"], p["fc2_b"], p["norm2_w"], p["norm2_b"], residual=x)
    return x


def patch_merging_v2(x, p):
    B, H, W, C = x.shape
    xb = x.astype(jnp.bfloat16)            # the merge glue + reduction run in bf16
    if (H % 2) or (W % 2):
        xb = jnp.pad(xb, ((0, 0), (0, H % 2), (0, W % 2), (0, 0)))
    x0 = xb[:, 0::2, 0::2, :]
    x1 = xb[:, 1::2, 0::2, :]
    x2 = xb[:, 0::2, 1::2, :]
    x3 = xb[:, 1::2, 1::2, :]
    xc = jnp.concatenate([x0, x1, x2, x3], axis=-1)          # (B, H/2, W/2, 4C)
    # Linear(4C, 2C, bias=False) + LayerNorm fused.
    return pallas_linear_ln(xc, p["red_w"], None, p["ln_w"], p["ln_b"])


def swin_v2_b_features(x, params):
    """x: NCHW (B, 3, H, W)  ->  NHWC (B, H/32, W/32, 1024)."""
    B, Cin, H, W = x.shape
    p4 = 4
    # Conv2d(3, 128, k=4, s=4) as a patch matmul (patch flattened (c, kh, kw)-major),
    # fused with the patch-embed LayerNorm.  Patch glue in bf16.
    patches = x.reshape(B, Cin, H // p4, p4, W // p4, p4).transpose(0, 2, 4, 1, 3, 5)
    patches = patches.reshape(B, H // p4, W // p4, Cin * p4 * p4).astype(jnp.bfloat16)
    y = pallas_linear_ln(patches, params["patch_w"], params["patch_b"],
                         params["patch_ln_w"], params["patch_ln_b"])
    for si, stage in enumerate(params["stages"]):
        nh = NUM_HEADS[si]
        for bi, blk in enumerate(stage["blocks"]):
            shift = 0 if bi % 2 == 0 else WINDOW // 2
            y = swin_block_v2(y, blk, nh, shift)
        if stage["merge"] is not None:
            y = patch_merging_v2(y, stage["merge"])
    return y


# ----------------------------------------------------------------------------
# Deterministic synthetic parameter initialization (swin_v2_b config)
# ----------------------------------------------------------------------------
def init_swin_v2_b_params(key):
    keys = iter(jax.random.split(key, 2048))

    def nrm(shape, std=0.02):
        return std * jax.random.normal(next(keys), shape, dtype=jnp.float32)

    def nrm_bf16(shape, std=0.02):
        return nrm(shape, std).astype(jnp.bfloat16)

    rel_table = jnp.asarray(_relative_coords_table(WINDOW))
    rel_index = jnp.asarray(_relative_position_index(WINDOW), dtype=jnp.int32)
    T = WINDOW * WINDOW

    # patch-embed weight pre-padded 48 -> 128 rows so the hot path never pads it.
    patch_w = jnp.pad(nrm((3 * 16, EMBED_DIM)), ((0, 128 - 3 * 16), (0, 0)))
    params = {
        "patch_w": patch_w.astype(jnp.bfloat16),
        "patch_b": jnp.zeros((EMBED_DIM,), jnp.float32),
        "patch_ln_w": jnp.ones((EMBED_DIM,), jnp.float32),
        "patch_ln_b": jnp.zeros((EMBED_DIM,), jnp.float32),
        "stages": [],
    }
    for si, (depth, nh) in enumerate(zip(DEPTHS, NUM_HEADS)):
        dim = EMBED_DIM * (2 ** si)
        blocks = []
        for bi in range(depth):
            qkv_b = nrm((3 * dim,))
            qkv_b = qkv_b.at[dim:2 * dim].set(0.0)          # Swin-V2 zeroes the k bias

            # CPB-MLP relative-position bias is weight-only: precompute it once
            # here (hoisted out of the forward pass), still through Pallas matmuls.
            cpb_w1 = nrm((2, CPB_HIDDEN))
            cpb_b1 = jnp.zeros((CPB_HIDDEN,), jnp.float32)
            cpb_w2 = nrm((CPB_HIDDEN, nh))
            h = pallas_linear(rel_table, cpb_w1, cpb_b1, act="relu")
            h = pallas_linear(h, cpb_w2, None)                           # (225, nh)
            bias = h[rel_index].reshape(T, T, nh).transpose(2, 0, 1)     # (nh, T, T)
            attn_bias = 16.0 * jax.nn.sigmoid(bias)

            logit_scale = jnp.full((nh,), math.log(10.0), jnp.float32)
            attn_scale = jnp.exp(jnp.minimum(logit_scale, math.log(100.0)))   # (nh,)

            blocks.append({
                "qkv_w": nrm_bf16((dim, 3 * dim)),
                "qkv_b": qkv_b,
                "proj_w": nrm_bf16((dim, dim)),
                "proj_b": jnp.zeros((dim,), jnp.float32),
                "attn_scale": attn_scale,                   # (nh,) -> SMEM in kernel
                "attn_bias": attn_bias,                     # (nh, T, T)
                "norm1_w": jnp.ones((dim,), jnp.float32),
                "norm1_b": jnp.zeros((dim,), jnp.float32),
                "fc1_w": nrm_bf16((dim, MLP_RATIO * dim)),
                "fc1_b": jnp.zeros((MLP_RATIO * dim,), jnp.float32),
                "fc2_w": nrm_bf16((MLP_RATIO * dim, dim)),
                "fc2_b": jnp.zeros((dim,), jnp.float32),
                "norm2_w": jnp.ones((dim,), jnp.float32),
                "norm2_b": jnp.zeros((dim,), jnp.float32),
            })
        merge = None
        if si < 3:
            merge = {
                "red_w": nrm_bf16((4 * dim, 2 * dim)),
                "ln_w": jnp.ones((2 * dim,), jnp.float32),
                "ln_b": jnp.zeros((2 * dim,), jnp.float32),
            }
        params["stages"].append({"blocks": blocks, "merge": merge})
    return params


if __name__ == "__main__":
    key = jax.random.PRNGKey(0)
    pkey, xkey = jax.random.split(key)
    params = init_swin_v2_b_params(pkey)
    # Small input consistent with the module: NCHW, 3 channels, 64x64 image.
    x = jax.random.normal(xkey, (1, 3, 64, 64), dtype=jnp.float32)
    fwd = jax.jit(swin_v2_b_features)
    y = jax.block_until_ready(fwd(x, params))
    assert y.shape == (1, 2, 2, 1024), y.shape
    assert bool(jnp.all(jnp.isfinite(y)))
    print("KERNEL_OK")
</pallas_src>

<mosaic_0001>
module attributes {stable_mosaic.version = 11 : i64} {
  func.func @kernel(%arg0: i32, %arg1: i32, %arg2: memref<232x128xf32, #tpu.memory_space<vmem>>, %arg3: memref<128x256xbf16, #tpu.memory_space<vmem>>, %arg4: memref<1x256xf32, #tpu.memory_space<vmem>>, %arg5: memref<232x256xf32, #tpu.memory_space<vmem>>) attributes {dimension_semantics = [#tpu.dimension_semantics<parallel>, #tpu.dimension_semantics<parallel>], iteration_bounds = array<i64: 1, 2>, scalar_prefetch = 0 : i64, scratch_operands = 0 : i64, tpu.core_type = #tpu.core_type<tc>, window_params = [{transform_indices = @transform_0, window_bounds = array<i64: 232, 128>}, {transform_indices = @transform_1, window_bounds = array<i64: 128, 256>}, {transform_indices = @transform_2, window_bounds = array<i64: 1, 256>}, {transform_indices = @transform_3, window_bounds = array<i64: 232, 256>}]} {
    %c0 = arith.constant 0 : index
    %c0_0 = arith.constant 0 : index
    %0 = vector.load %arg2[%c0, %c0_0] : memref<232x128xf32, #tpu.memory_space<vmem>>, vector<232x128xf32>
    %1 = arith.truncf %0 : vector<232x128xf32> to vector<232x128xbf16>
    %c0_1 = arith.constant 0 : index
    %c0_2 = arith.constant 0 : index
    %2 = vector.load %arg3[%c0_1, %c0_2] : memref<128x256xbf16, #tpu.memory_space<vmem>>, vector<128x256xbf16>
    %cst = arith.constant dense<0.000000e+00> : vector<232x256xf32>
    %3 = tpu.matmul %1, %2, %cst {dimension_numbers = #tpu.dot_dimension_numbers<[1], [0], [0], [1], [0, 0, 1, 1], [], []>} : vector<232x128xbf16>, vector<128x256xbf16>, vector<232x256xf32> -> vector<232x256xf32>
    %c0_3 = arith.constant 0 : index
    %c0_4 = arith.constant 0 : index
    %4 = vector.load %arg4[%c0_3, %c0_4] : memref<1x256xf32, #tpu.memory_space<vmem>>, vector<1x256xf32>
    %5 = vector.broadcast %4 : vector<1x256xf32> to vector<232x256xf32>
    %6 = arith.addf %3, %5 : vector<232x256xf32>
    %cst_5 = arith.constant 0.000000e+00 : f32
    %7 = vector.broadcast %cst_5 : f32 to vector<232x256xf32>
    %8 = arith.maximumf %6, %7 : vector<232x256xf32>
    %c0_6 = arith.constant 0 : index
    %c0_7 = arith.constant 0 : index
    %9 = vector.load %arg5[%c0_6, %c0_7] : memref<232x256xf32, #tpu.memory_space<vmem>>, vector<232x256xf32>
    tpu.vector_store %arg5[%c0_6, %c0_7], %8 {strides = array<i32>} : memref<232x256xf32, #tpu.memory_space<vmem>>, vector<232x256xf32>,
    return
  }
  func.func @transform_0(%arg0: i32, %arg1: i32) -> (i32, i32) {
    %c0_i32 = arith.constant 0 : i32
    %c0_i32_0 = arith.constant 0 : i32
    return %arg0, %c0_i32 : i32, i32
  }
  func.func @transform_1(%arg0: i32, %arg1: i32) -> (i32, i32) {
    %c0_i32 = arith.constant 0 : i32
    %c0_i32_0 = arith.constant 0 : i32
    return %c0_i32, %arg1 : i32, i32
  }
  func.func @transform_2(%arg0: i32, %arg1: i32) -> (i32, i32) {
    %c0_i32 = arith.constant 0 : i32
    %c0_i32_0 = arith.constant 0 : i32
    return %c0_i32, %arg1 : i32, i32
  }
  func.func @transform_3(%arg0: i32, %arg1: i32) -> (i32, i32) {
    %c0_i32 = arith.constant 0 : i32
    return %arg0, %arg1 : i32, i32
  }
}

</mosaic_0001>

<llo_original>
// kernel: tpu_custom_call.1
$region0: #{tpu_custom_call.1}
  #allocation0 [shape = 'u32[]', space=smem, size = 0x4, offset = 0x4, fixed_abs, tag = 'smem constant byte address 0x4 - core index']
  #allocation1 [shape = 'u32[144,128]{1,0:T(1,128)}', space=vmem, size = 0x12000, scoped, tag = 'internal scratch']
  %s0 = inlined_call_operand.hbm [shape: f32[232,128], index: 0, kind: input, shape index: {}]
  %s1 = inlined_call_operand.hbm [shape: bf16[128,512], index: 1, kind: input, shape index: {}]
  %s2 = inlined_call_operand.vmem [shape: f32[1,512], index: 2, kind: input, shape index: {}]
  %s3 = inlined_call_operand.hbm [shape: f32[232,512], index: 3, kind: output, shape index: {}]
  %s4 = sld [smem:[#allocation0]]
  $region53: #{tpu_custom_call.1} parent=0
    _
  %s6 = ssub.s32 1, %s4
  %s7 = scalar_select 0, %s6, %s4
  $region1: #{tpu_custom_call.1} parent=0
    #allocation2 [shape = 'u8[118784]{0}', space=vmem, size = 0x1d000, scoped, tag = 'input window, operand 0, single buffered']
    #allocation3 [shape = 's32[2]{0}', space=sflag, size = 0x8, scoped, tag = 'scoped memory for tpu_custom_call.1']
    #allocation4 [shape = 's32[2]{0}', space=sflag, size = 0x8, scoped, tag = 'scoped memory for tpu_custom_call.1']
    #allocation5 [shape = 'u8[131072]{0}', space=vmem, size = 0x20000, scoped, tag = 'input window, operand 1']
    #allocation6 [shape = 's32[2]{0}', space=sflag, size = 0x8, scoped, tag = 'scoped memory for tpu_custom_call.1']
    #allocation7 [shape = 'u8[475136]{0}', space=vmem, size = 0x74000, scoped, tag = 'output window, operand 0']
    %8 = vsyncpa [#allocation3], 0
    %9 = vsyncpa [#allocation6], 0
    %s10 = scalar_lea.sflag [#allocation6], 1
    %11 = vsyncpa %s10, 0
    %12 = vsyncpa [#allocation4], 0
    %s13 = scalar_lea.sflag [#allocation4], 1
    %14 = vsyncpa %s13, 0
    loop: start=0, step=1, limit=4
    $region2: #{tpu_custom_call.1} parent=1 // loop_pre_header
      _
    $region3: #{tpu_custom_call.1} parent=1 // loop_header
      %s16 = sphi 0, %s20
      %p17 = scmp.ge.s32.totalorder %s16, 4
      %s23 = sphi 0, %s35
      %s24 = sphi 0, %s31
      %s25 = sphi 0, %s23
      %s26 = sphi 0, %s24
      %s27 = sphi 0, %s25
      %s28 = sphi 0, %s26
      %s38 = sphi 0, %s40
      %s41 = sphi 0, %s38
      %s42 = sphi 0, %s41
      %s58 = sphi 0, %s42
      %s64 = sphi 0, %s66
      %s67 = sphi 0, %s64
      %s68 = sphi 0, %s67
      %s84 = sphi 0, %s68
      %s90 = sphi 0, %s92
      %s93 = sphi 0, %s90
      %s94 = sphi 0, %s93
      %s110 = sphi 0, %s94
      %s118 = sphi 0, %s120
      %s121 = sphi 0, %s118
      %s122 = sphi 0, %s121
      %s138 = sphi 0, %s122
    $region4: #{tpu_custom_call.1} parent=1 // loop_header_branch
      %19 = sbr.rel (%p17) target = $region8
    $region5: #{tpu_custom_call.1} parent=1 // loop_body
      %s21 = ssub.s32 %s16, 1
      %s22 = ssub.s32 %s16, 2
      %s29 = sadd.s32 1, %s24
      %p30 = scmp.ge.s32.totalorder %s29, 2
      %s31 = scalar_select %p30, 0, %s29
      %s32 = sadd.s32 1, %s23
      %s33 = scalar_select %p30, %s32, %s23
      %p34 = scmp.ge.s32.totalorder %s33, 1
      %s35 = scalar_select %p34, 0, %s33
      %s36 = ssub.s32 %s23, %s35
      %p37 = scmp.eq.s32.totalorder %s36, 0
      %s39 = sadd.s32 %s38, 1
      %s40 = scalar_select %p37, %s38, %s39
      %p43 = pneg %p37
      %p44 = scmp.eq.s32.totalorder %s16, 1
      %p45 = por %p43, %p44
      %p46 = scmp.ne.s32.totalorder %s38, %s41
      %p47 = scmp.eq.s32.totalorder %s16, 0
      %p48 = por %p46, %p47
      %p49 = scmp.ne.s32.totalorder %s38, %s41
      %p50 = scmp.eq.s32.totalorder %s21, 1
      %p51 = por %p49, %p50
      %p52 = scmp.ne.s32.totalorder %s41, %s42
      %p53 = scmp.eq.s32.totalorder %s21, 0
      %p54 = por %p52, %p53
      %p55 = scmp.ne.s32.totalorder %s41, %s42
      %p56 = scmp.eq.s32.totalorder %s22, 1
      %p57 = por %p55, %p56
      %p59 = scmp.ne.s32.totalorder %s42, %s58
      %p60 = scmp.eq.s32.totalorder %s22, 0
      %p61 = por %p59, %p60
      %s62 = ssub.s32 %s24, %s31
      %p63 = scmp.eq.s32.totalorder %s62, 0
      %s65 = sadd.s32 %s64, 1
      %s66 = scalar_select %p63, %s64, %s65
      %p69 = pneg %p63
      %p70 = scmp.eq.s32.totalorder %s16, 1
      %p71 = por %p69, %p70
      %p72 = scmp.ne.s32.totalorder %s64, %s67
      %p73 = scmp.eq.s32.totalorder %s16, 0
      %p74 = por %p72, %p73
      %p75 = scmp.ne.s32.totalorder %s64, %s67
      %p76 = scmp.eq.s32.totalorder %s21, 1
      %p77 = por %p75, %p76
      %p78 = scmp.ne.s32.totalorder %s67, %s68
      %p79 = scmp.eq.s32.totalorder %s21, 0
      %p80 = por %p78, %p79
      %p81 = scmp.ne.s32.totalorder %s67, %s68
      %p82 = scmp.eq.s32.totalorder %s22, 1
      %p83 = por %p81, %p82
      %p85 = scmp.ne.s32.totalorder %s68, %s84
      %p86 = scmp.eq.s32.totalorder %s22, 0
      %p87 = por %p85, %p86
      %s88 = ssub.s32 %s24, %s31
      %p89 = scmp.eq.s32.totalorder %s88, 0
      %s91 = sadd.s32 %s90, 1
      %s92 = scalar_select %p89, %s90, %s91
      %p95 = pneg %p89
      %p96 = scmp.eq.s32.totalorder %s16, 1
      %p97 = por %p95, %p96
      %p98 = scmp.ne.s32.totalorder %s90, %s93
      %p99 = scmp.eq.s32.totalorder %s16, 0
      %p100 = por %p98, %p99
      %p101 = scmp.ne.s32.totalorder %s90, %s93
      %p102 = scmp.eq.s32.totalorder %s21, 1
      %p103 = por %p101, %p102
      %p104 = scmp.ne.s32.totalorder %s93, %s94
      %p105 = scmp.eq.s32.totalorder %s21, 0
      %p106 = por %p104, %p105
      %p107 = scmp.ne.s32.totalorder %s93, %s94
      %p108 = scmp.eq.s32.totalorder %s22, 1
      %p109 = por %p107, %p108
      %p111 = scmp.ne.s32.totalorder %s94, %s110
      %p112 = scmp.eq.s32.totalorder %s22, 0
      %p113 = por %p111, %p112
      %s114 = ssub.s32 %s23, %s35
      %s115 = ssub.s32 %s24, %s31
      %s116 = sor.u32 %s114, %s115
      %p117 = scmp.eq.s32.totalorder %s116, 0
      %s119 = sadd.s32 %s118, 1
      %s120 = scalar_select %p117, %s118, %s119
      %p123 = pneg %p117
      %p124 = scmp.eq.s32.totalorder %s16, 1
      %p125 = por %p123, %p124
      %p126 = scmp.ne.s32.totalorder %s118, %s121
      %p127 = scmp.eq.s32.totalorder %s16, 0
      %p128 = por %p126, %p127
      %p129 = scmp.ne.s32.totalorder %s118, %s121
      %p130 = scmp.eq.s32.totalorder %s21, 1
      %p131 = por %p129, %p130
      %p132 = scmp.ne.s32.totalorder %s121, %s122
      %p133 = scmp.eq.s32.totalorder %s21, 0
      %p134 = por %p132, %p133
      %p135 = scmp.ne.s32.totalorder %s121, %s122
      %p136 = scmp.eq.s32.totalorder %s22, 1
      %p137 = por %p135, %p136
      %p139 = scmp.ne.s32.totalorder %s122, %s138
      %p140 = scmp.eq.s32.totalorder %s22, 0
      %p141 = por %p139, %p140
      %p142 = scmp.le.s32.totalorder 1, %s16
      %p143 = scmp.lt.s32.totalorder %s16, 3
      %p144 = pnand %p142, %p143
      %p145 = pneg %p144
      // Predicated region
      $region9: #{tpu_custom_call.1} parent=5 // pred_check
        _
      $region10: #{tpu_custom_call.1} parent=5 // pred_check_branch
        %147 = sbr.rel (%p144) target = $region12
      $region11: #{tpu_custom_call.1} parent=5 // pred_region
        %s148 = ssub.s32 %s16, 1
        // Predicated region
        $region13: #{tpu_custom_call.1} parent=11 // pred_check
          %p149 = pneg %p54
        $region14: #{tpu_custom_call.1} parent=11 // pred_check_branch
          %151 = sbr.rel (%p149) target = $region16
        $region15: #{tpu_custom_call.1} parent=11 // pred_region
          %s152 = smul.u32 29, %s25
          %s154 = ssub.s32 3712, 3712
          %155 = vsyncadd [#allocation3], %s154
          %s156 = smul.addr %s152, 128
          %s157 = scalar_lea.hbm %s0, %s156
          %s158 = sshll.u32 [#allocation2], 4
          %s159 = int_to_ptr.vmem [resolvable:$true] %s158
          %164 = dma.hbm_to_vmem [thread:$0]  %s157, 3712, %s159, [#allocation3], 128, 128, 8
        $region16: #{tpu_custom_call.1} parent=11 // pred_fallthru
          _
      $region12: #{tpu_custom_call.1} parent=5 // pred_fallthru
        _
      %p165 = scmp.lt.s32.totalorder %s16, 2
      // Predicated region
      $region17: #{tpu_custom_call.1} parent=5 // pred_check
        %p166 = pneg %p165
      $region18: #{tpu_custom_call.1} parent=5 // pred_check_branch
        %168 = sbr.rel (%p166) target = $region20
      $region19: #{tpu_custom_call.1} parent=5 // pred_region
        // Predicated region
        $region21: #{tpu_custom_call.1} parent=19 // pred_check
          %p169 = pneg %p74
        $region22: #{tpu_custom_call.1} parent=19 // pred_check_branch
          %171 = sbr.rel (%p169) target = $region24
        $region23: #{tpu_custom_call.1} parent=19 // pred_region
          %s172 = sand.u32 %s64, 1
          %s173 = scalar_lea.sflag [#allocation6], %s172
          %s174 = sand.u32 %s64, 1
          %s175 = smul.addr %s174, 128
          %s176 = scalar_lea.vmem [#allocation5], %s175
          %s177 = smul.u32 2, %s24
          %s179 = ssub.s32 2048, 2048
          %180 = vsyncadd %s173, %s179
          %s181 = smul.addr %s177, 64
          %s182 = scalar_lea.hbm %s1, %s181
          %s183 = sshll.u32 %s176, 4
          %s184 = int_to_ptr.vmem [resolvable:$true] %s183
          %189 = dma.hbm_to_vmem [thread:$0]  %s182, 2048, %s184, %s173, 256, 128, 8
        $region24: #{tpu_custom_call.1} parent=19 // pred_fallthru
          _
        // Predicated region
        $region25: #{tpu_custom_call.1} parent=19 // pred_check
          %p190 = pneg %p100
        $region26: #{tpu_custom_call.1} parent=19 // pred_check_branch
          %192 = sbr.rel (%p190) target = $region28
        $region27: #{tpu_custom_call.1} parent=19 // pred_region
          %s193 = smul.u32 2, %s24
          %p194 = scmp.lt.s32.totalorder %s193, 3
          %s195 = scalar_select %p194, %s193, 3
          %s196 = scalar_lea.vmem %s2, %s195
          %s197 = smul.u32 2, %s24
        $region28: #{tpu_custom_call.1} parent=19 // pred_fallthru
          _
      $region20: #{tpu_custom_call.1} parent=5 // pred_fallthru
        _
      %p198 = scmp.le.s32.totalorder 1, %s16
      %p199 = scmp.lt.s32.totalorder %s16, 3
      %p200 = pnand %p198, %p199
      %p201 = pneg %p200
      // Predicated region
      $region29: #{tpu_custom_call.1} parent=5 // pred_check
        _
      $region30: #{tpu_custom_call.1} parent=5 // pred_check_branch
        %203 = sbr.rel (%p200) target = $region32
      $region31: #{tpu_custom_call.1} parent=5 // pred_region
        %s204 = ssub.s32 %s16, 1
        // Predicated region
        $region33: #{tpu_custom_call.1} parent=31 // pred_check
          %p205 = pneg %p54
        $region34: #{tpu_custom_call.1} parent=31 // pred_check_branch
          %207 = sbr.rel (%p205) target = $region36
        $region35: #{tpu_custom_call.1} parent=31 // pred_region
          %208 = dma.done [#allocation3], 3712
        $region36: #{tpu_custom_call.1} parent=31 // pred_fallthru
          _
        %s209 = sand.u32 %s67, 1
        %s210 = scalar_lea.sflag [#allocation6], %s209
        %s211 = sand.u32 %s67, 1
        %s212 = smul.addr %s211, 128
        %s213 = scalar_lea.vmem [#allocation5], %s212
        // Predicated region
        $region37: #{tpu_custom_call.1} parent=31 // pred_check
          %p214 = pneg %p80
        $region38: #{tpu_custom_call.1} parent=31 // pred_check_branch
          %216 = sbr.rel (%p214) target = $region40
        $region39: #{tpu_custom_call.1} parent=31 // pred_region
          %217 = dma.done %s210, 2048
        $region40: #{tpu_custom_call.1} parent=31 // pred_fallthru
          _
        %p218 = pneg %p54
        %p219 = pneg %p51
        %s220 = sand.u32 %s67, 1
        %s221 = scalar_lea.sflag [#allocation6], %s220
        %s222 = sand.u32 %s67, 1
        %s223 = smul.addr %s222, 128
        %s224 = scalar_lea.vmem [#allocation5], %s223
        %p225 = pneg %p80
        %p226 = pneg %p77
        %s227 = smul.u32 2, %s26
        %p228 = scmp.lt.s32.totalorder %s227, 3
        %s229 = scalar_select %p228, %s227, 3
        %s230 = scalar_lea.vmem %s2, %s229
        %p231 = pneg %p106
        %p232 = pneg %p103
        %p233 = pneg %p134
        %p234 = pneg %p131
        %s235 = sand.u32 %s121, 1
        %s236 = scalar_lea.sflag [#allocation4], %s235
        %s237 = sand.u32 %s121, 1
        %s238 = smul.addr %s237, 464
        %s239 = scalar_lea.vmem [#allocation7], %s238
        %s240 = smul.u32 29, %s25
        %s241 = smul.u32 2, %s26
        %s242 = smul.u32 2, %s26
        %p243 = scmp.lt.s32.totalorder %s242, 3
        %s244 = scalar_select %p243, %s242, 3
        %s245 = scalar_lea.vmem %s2, %s244
        %s246 = smul.u32 2, %s26
        %s247 = smul.u32 29, %s25
        %s248 = smul.u32 2, %s26
        %v250 = vld [vmem:[#allocation2] sm:$0xff]
        %v251 = vld [vmem:[#allocation2 + $0x8] sm:$0xff]
        %v252 = vld [vmem:[#allocation2 + $0x10] sm:$0xff]
        %v253 = vld [vmem:[#allocation2 + $0x18] sm:$0xff]
        %v254 = vld [vmem:[#allocation2 + $0x20] sm:$0xff]
        %v255 = vld [vmem:[#allocation2 + $0x28] sm:$0xff]
        %v256 = vld [vmem:[#allocation2 + $0x30] sm:$0xff]
        %v257 = vld [vmem:[#allocation2 + $0x38] sm:$0xff]
        %v258 = vld [vmem:[#allocation2 + $0x40] sm:$0xff]
        %v259 = vld [vmem:[#allocation2 + $0x48] sm:$0xff]
        %v260 = vld [vmem:[#allocation2 + $0x50] sm:$0xff]
        %v261 = vld [vmem:[#allocation2 + $0x58] sm:$0xff]
        %v262 = vld [vmem:[#allocation2 + $0x60] sm:$0xff]
        %v263 = vld [vmem:[#allocation2 + $0x68] sm:$0xff]
        %v264 = vld [vmem:[#allocation2 + $0x70] sm:$0xff]
        %v265 = vld [vmem:[#allocation2 + $0x78] sm:$0xff]
        %v266 = vld [vmem:[#allocation2 + $0x80] sm:$0xff]
        %v267 = vld [vmem:[#allocation2 + $0x88] sm:$0xff]
        %v268 = vld [vmem:[#allocation2 + $0x90] sm:$0xff]
        %v269 = vld [vmem:[#allocation2 + $0x98] sm:$0xff]
        %v270 = vld [vmem:[#allocation2 + $0xa0] sm:$0xff]
        %v271 = vld [vmem:[#allocation2 + $0xa8] sm:$0xff]
        %v272 = vld [vmem:[#allocation2 + $0xb0] sm:$0xff]
        %v273 = vld [vmem:[#allocation2 + $0xb8] sm:$0xff]
        %v274 = vld [vmem:[#allocation2 + $0xc0] sm:$0xff]
        %v275 = vld [vmem:[#allocation2 + $0xc8] sm:$0xff]
        %v276 = vld [vmem:[#allocation2 + $0xd0] sm:$0xff]
        %v277 = vld [vmem:[#allocation2 + $0xd8] sm:$0xff]
        %v278 = vld [vmem:[#allocation2 + $0xe0] sm:$0xff]
        %v279 = vpack.c.bf16 %v251, %v250
        %v280 = vpack.c.bf16 %v253, %v252
        %v281 = vpack.c.bf16 %v255, %v254
        %v282 = vpack.c.bf16 %v257, %v256
        %v283 = vpack.c.bf16 %v259, %v258
        %v284 = vpack.c.bf16 %v261, %v260
        %v285 = vpack.c.bf16 %v263, %v262
        %v286 = vpack.c.bf16 %v265, %v264
        %v287 = vpack.c.bf16 %v267, %v266
        %v288 = vpack.c.bf16 %v269, %v268
        %v289 = vpack.c.bf16 %v271, %v270
        %v290 = vpack.c.bf16 %v273, %v272
        %v291 = vpack.c.bf16 %v275, %v274
        %v292 = vpack.c.bf16 %v277, %v276
        %v293 = vpack.c.bf16 %v278, %v278
        %v294 = vld [vmem:[%s213] sm:$0xff]
        %v295 = vld [vmem:[%s213 + $0x8] sm:$0xff]
        %v296 = vld [vmem:[%s213 + $0x10] sm:$0xff]
        %v297 = vld [vmem:[%s213 + $0x18] sm:$0xff]
        %v298 = vld [vmem:[%s213 + $0x20] sm:$0xff]
        %v299 = vld [vmem:[%s213 + $0x28] sm:$0xff]
        %v300 = vld [vmem:[%s213 + $0x30] sm:$0xff]
        %v301 = vld [vmem:[%s213 + $0x38] sm:$0xff]
        %v302 = vld [vmem:[%s213 + $0x40] sm:$0xff]
        %v303 = vld [vmem:[%s213 + $0x48] sm:$0xff]
        %v304 = vld [vmem:[%s213 + $0x50] sm:$0xff]
        %v305 = vld [vmem:[%s213 + $0x58] sm:$0xff]
        %v306 = vld [vmem:[%s213 + $0x60] sm:$0xff]
        %v307 = vld [vmem:[%s213 + $0x68] sm:$0xff]
        %v308 = vld [vmem:[%s213 + $0x70] sm:$0xff]
        %v309 = vld [vmem:[%s213 + $0x78] sm:$0xff]
        %v310 = vld [vmem:[%s245] sm:$0x3]
        %v312 = vlaneseq
        %v313 = vshrl.u32 %v312, 7
        %v314 = vsub.s32 0, %v313
        %v315 = vrot.slane %v310, %v314
        %v316 = vlaneseq
        %v317 = vshrl.u32 %v316, 7
        %v318 = vsub.s32 1, %v317
        %v319 = vrot.slane %v310, %v318
        %v338 = vunpack.c.l.b16 %v294
        %v339 = vunpack.c.h.b16 %v294
        %v340 = vunpack.c.l.b16 %v295
        %v341 = vunpack.c.h.b16 %v295
        %v342 = vunpack.c.l.b16 %v296
        %v343 = vunpack.c.h.b16 %v296
        %v344 = vunpack.c.l.b16 %v297
        %v345 = vunpack.c.h.b16 %v297
        %v346 = vunpack.c.l.b16 %v298
        %v347 = vunpack.c.h.b16 %v298
        %v348 = vunpack.c.l.b16 %v299
        %v349 = vunpack.c.h.b16 %v299
        %v350 = vunpack.c.l.b16 %v300
        %v351 = vunpack.c.h.b16 %v300
        %v352 = vunpack.c.l.b16 %v301
        %v353 = vunpack.c.h.b16 %v301
        %v354 = vunpack.c.l.b16 %v302
        %v355 = vunpack.c.h.b16 %v302
        %v356 = vunpack.c.l.b16 %v303
        %v357 = vunpack.c.h.b16 %v303
        %v358 = vunpack.c.l.b16 %v304
        %v359 = vunpack.c.h.b16 %v304
        %v360 = vunpack.c.l.b16 %v305
        %v361 = vunpack.c.h.b16 %v305
        %v362 = vunpack.c.l.b16 %v306
        %v363 = vunpack.c.h.b16 %v306
        %v364 = vunpack.c.l.b16 %v307
        %v365 = vunpack.c.h.b16 %v307
        %v366 = vunpack.c.l.b16 %v308
        %v367 = vunpack.c.h.b16 %v308
        %v368 = vunpack.c.l.b16 %v309
        %v369 = vunpack.c.h.b16 %v309
        %v370 = vpack.c.b16 %v340, %v338
        %v371 = vpack.c.b16 %v341, %v339
        %v372 = vpack.c.b16 %v344, %v342
        %v373 = vpack.c.b16 %v345, %v343
        %v374 = vpack.c.b16 %v348, %v346
        %v375 = vpack.c.b16 %v349, %v347
        %v376 = vpack.c.b16 %v352, %v350
        %v377 = vpack.c.b16 %v353, %v351
        %v378 = vpack.c.b16 %v356, %v354
        %v379 = vpack.c.b16 %v357, %v355
        %v380 = vpack.c.b16 %v360, %v358
        %v381 = vpack.c.b16 %v361, %v359
        %v382 = vpack.c.b16 %v364, %v362
        %v383 = vpack.c.b16 %v365, %v363
        %v384 = vpack.c.b16 %v368, %v366
        %v385 = vpack.c.b16 %v369, %v367
        %402 = vmatprep.subr.bf16.mxu0 %v371
        %403 = vmatpush1.bf16.msra.mxu0 %v370
        %404 = vmatprep.subr.bf16.mxu0 %v373
        %405 = vmatpush1.bf16.msra.mxu0 %v372
        %406 = vmatprep.subr.bf16.mxu0 %v375
        %407 = vmatpush1.bf16.msra.mxu0 %v374
        %408 = vmatprep.subr.bf16.mxu0 %v377
        %409 = vmatpush1.bf16.msra.mxu0 %v376
        %410 = vmatprep.subr.bf16.mxu0 %v379
        %411 = vmatpush1.bf16.msra.mxu0 %v378
        %412 = vmatprep.subr.bf16.mxu0 %v381
        %413 = vmatpush1.bf16.msra.mxu0 %v380
        %414 = vmatprep.subr.bf16.mxu0 %v383
        %415 = vmatpush1.bf16.msra.mxu0 %v382
        %416 = vmatprep.subr.bf16.mxu0 %v385
        %417 = vmatpush1.bf16.msra.mxu0 %v384
        %418 = vmatprep.subr.bf16.mxu0 0
        %419 = vmatpush1.bf16.msra.mxu0 0
        %420 = vmatprep.subr.bf16.mxu0 0
        %421 = vmatpush1.bf16.msra.mxu0 0
        %422 = vmatprep.subr.bf16.mxu0 0
        %423 = vmatpush1.bf16.msra.mxu0 0
        %424 = vmatprep.subr.bf16.mxu0 0
        %425 = vmatpush1.bf16.msra.mxu0 0
        %426 = vmatprep.subr.bf16.mxu0 0
        %427 = vmatpush1.bf16.msra.mxu0 0
        %428 = vmatprep.subr.bf16.mxu0 0
        %429 = vmatpush1.bf16.msra.mxu0 0
        %430 = vmatprep.subr.bf16.mxu0 0
        %431 = vmatpush1.bf16.msra.mxu0 0
        %432 = vmatprep.subr.bf16.mxu0 0
        %433 = vmatpush1.bf16.msra.mxu0 0
        %434 = vmatprep.mubr.bf16.mxu0 0
        %435 = vmatmul.mubr.bf16.gmra.mrb[0].mxu0 %v279
        %v436 = vpop.f32.mrb[0].mxu0
        %v437 = vadd.f32 %v315, %v436
        %v438 = vpop.f32.mrb[0].mxu0
        %v439 = vadd.f32 %v319, %v438
        %v440 = vpop.f32.mrb[0].mxu0
        %v441 = vadd.f32 %v315, %v440
        %v442 = vpop.f32.mrb[0].mxu0
        %v443 = vadd.f32 %v319, %v442
        %444 = vmatprep.mubr.bf16.mxu0 0
        %445 = vmatmul.mubr.bf16.gmra.mrb[0].mxu0 %v280
        %v446 = vpop.f32.mrb[0].mxu0
        %v447 = vadd.f32 %v315, %v446
        %v448 = vpop.f32.mrb[0].mxu0
        %v449 = vadd.f32 %v319, %v448
        %v450 = vpop.f32.mrb[0].mxu0
        %v451 = vadd.f32 %v315, %v450
        %v452 = vpop.f32.mrb[0].mxu0
        %v453 = vadd.f32 %v319, %v452
        %454 = vmatprep.mubr.bf16.mxu0 0
        %455 = vmatmul.mubr.bf16.gmra.mrb[0].mxu0 %v281
        %v456 = vpop.f32.mrb[0].mxu0
        %v457 = vadd.f32 %v315, %v456
        %v458 = vpop.f32.mrb[0].mxu0
        %v459 = vadd.f32 %v319, %v458
        %v460 = vpop.f32.mrb[0].mxu0
        %v461 = vadd.f32 %v315, %v460
        %v462 = vpop.f32.mrb[0].mxu0
        %v463 = vadd.f32 %v319, %v462
        %464 = vmatprep.mubr.bf16.mxu0 0
        %465 = vmatmul.mubr.bf16.gmra.mrb[0].mxu0 %v282
        %v466 = vpop.f32.mrb[0].mxu0
        %v467 = vadd.f32 %v315, %v466
        %v468 = vpop.f32.mrb[0].mxu0
        %v469 = vadd.f32 %v319, %v468
        %v470 = vpop.f32.mrb[0].mxu0
        %v471 = vadd.f32 %v315, %v470
        %v472 = vpop.f32.mrb[0].mxu0
        %v473 = vadd.f32 %v319, %v472
        %474 = vmatprep.mubr.bf16.mxu0 0
        %475 = vmatmul.mubr.bf16.gmra.mrb[0].mxu0 %v283
        %v476 = vpop.f32.mrb[0].mxu0
        %v477 = vadd.f32 %v315, %v476
        %v478 = vpop.f32.mrb[0].mxu0
        %v479 = vadd.f32 %v319, %v478
        %v480 = vpop.f32.mrb[0].mxu0
        %v481 = vadd.f32 %v315, %v480
        %v482 = vpop.f32.mrb[0].mxu0
        %v483 = vadd.f32 %v319, %v482
        %484 = vmatprep.mubr.bf16.mxu0 0
        %485 = vmatmul.mubr.bf16.gmra.mrb[0].mxu0 %v284
        %v486 = vpop.f32.mrb[0].mxu0
        %v487 = vadd.f32 %v315, %v486
        %v488 = vpop.f32.mrb[0].mxu0
        %v489 = vadd.f32 %v319, %v488
        %v490 = vpop.f32.mrb[0].mxu0
        %v491 = vadd.f32 %v315, %v490
        %v492 = vpop.f32.mrb[0].mxu0
        %v493 = vadd.f32 %v319, %v492
        %494 = vmatprep.mubr.bf16.mxu0 0
        %495 = vmatmul.mubr.bf16.gmra.mrb[0].mxu0 %v285
        %v496 = vpop.f32.mrb[0].mxu0
        %v497 = vadd.f32 %v315, %v496
        %v498 = vpop.f32.mrb[0].mxu0
        %v499 = vadd.f32 %v319, %v498
        %v500 = vpop.f32.mrb[0].mxu0
        %v501 = vadd.f32 %v315, %v500
        %v502 = vpop.f32.mrb[0].mxu0
        %v503 = vadd.f32 %v319, %v502
        %504 = vmatprep.mubr.bf16.mxu0 0
        %505 = vmatmul.mubr.bf16.gmra.mrb[0].mxu0 %v286
        %v506 = vpop.f32.mrb[0].mxu0
        %v507 = vadd.f32 %v315, %v506
        %v508 = vpop.f32.mrb[0].mxu0
        %v509 = vadd.f32 %v319, %v508
        %v510 = vpop.f32.mrb[0].mxu0
        %v511 = vadd.f32 %v315, %v510
        %v512 = vpop.f32.mrb[0].mxu0
        %v513 = vadd.f32 %v319, %v512
        %514 = vmatprep.mubr.bf16.mxu0 0
        %515 = vmatmul.mubr.bf16.gmra.mrb[0].mxu0 %v287
        %v516 = vpop.f32.mrb[0].mxu0
        %v517 = vadd.f32 %v315, %v516
        %v518 = vpop.f32.mrb[0].mxu0
        %v519 = vadd.f32 %v319, %v518
        %v520 = vpop.f32.mrb[0].mxu0
        %v521 = vadd.f32 %v315, %v520
        %v522 = vpop.f32.mrb[0].mxu0
        %v523 = vadd.f32 %v319, %v522
        %524 = vmatprep.mubr.bf16.mxu0 0
        %525 = vmatmul.mubr.bf16.gmra.mrb[0].mxu0 %v288
        %v526 = vpop.f32.mrb[0].mxu0
        %v527 = vadd.f32 %v315, %v526
        %v528 = vpop.f32.mrb[0].mxu0
        %v529 = vadd.f32 %v319, %v528
        %v530 = vpop.f32.mrb[0].mxu0
        %v531 = vadd.f32 %v315, %v530
        %v532 = vpop.f32.mrb[0].mxu0
        %v533 = vadd.f32 %v319, %v532
        %534 = vmatprep.mubr.bf16.mxu0 0
        %535 = vmatmul.mubr.bf16.gmra.mrb[0].mxu0 %v289
        %v536 = vpop.f32.mrb[0].mxu0
        %v537 = vadd.f32 %v315, %v536
        %v538 = vpop.f32.mrb[0].mxu0
        %v539 = vadd.f32 %v319, %v538
        %v540 = vpop.f32.mrb[0].mxu0
        %v541 = vadd.f32 %v315, %v540
        %v542 = vpop.f32.mrb[0].mxu0
        %v543 = vadd.f32 %v319, %v542
        %544 = vmatprep.mubr.bf16.mxu0 0
        %545 = vmatmul.mubr.bf16.gmra.mrb[0].mxu0 %v290
        %v546 = vpop.f32.mrb[0].mxu0
        %v547 = vadd.f32 %v315, %v546
        %v548 = vpop.f32.mrb[0].mxu0
        %v549 = vadd.f32 %v319, %v548
        %v550 = vpop.f32.mrb[0].mxu0
        %v551 = vadd.f32 %v315, %v550
        %v552 = vpop.f32.mrb[0].mxu0
        %v553 = vadd.f32 %v319, %v552
        %554 = vmatprep.mubr.bf16.mxu0 0
        %555 = vmatmul.mubr.bf16.gmra.mrb[0].mxu0 %v291
        %v556 = vpop.f32.mrb[0].mxu0
        %v557 = vadd.f32 %v315, %v556
        %v558 = vpop.f32.mrb[0].mxu0
        %v559 = vadd.f32 %v319, %v558
        %v560 = vpop.f32.mrb[0].mxu0
        %v561 = vadd.f32 %v315, %v560
        %v562 = vpop.f32.mrb[0].mxu0
        %v563 = vadd.f32 %v319, %v562
        %564 = vmatprep.mubr.bf16.mxu0 0
        %565 = vmatmul.mubr.bf16.gmra.mrb[0].mxu0 %v292
        %v566 = vpop.f32.mrb[0].mxu0
        %v567 = vadd.f32 %v315, %v566
        %v568 = vpop.f32.mrb[0].mxu0
        %v569 = vadd.f32 %v319, %v568
        %v570 = vpop.f32.mrb[0].mxu0
        %v571 = vadd.f32 %v315, %v570
        %v572 = vpop.f32.mrb[0].mxu0
        %v573 = vadd.f32 %v319, %v572
        %574 = vmatprep.mubr.bf16.mxu0 0
        %575 = vmatmul.mubr.bf16.gmra.mrb[0].mxu0 %v293
        %v576 = vpop.f32.mrb[0].mxu0
        %v577 = vadd.f32 %v315, %v576
        %v578 = vpop.f32.mrb[0].mxu0
        %v579 = vadd.f32 %v319, %v578
        %v580 = vpop.f32.mrb[0].mxu0
        %v581 = vpop.f32.mrb[0].mxu0
        %582 = vdwg.mxu0
        %v583 = vmax.f32 %v437, 0.0
        %v584 = vmax.f32 %v439, 0.0
        %v585 = vmax.f32 %v441, 0.0
        %v586 = vmax.f32 %v443, 0.0
        %v587 = vmax.f32 %v447, 0.0
        %v588 = vmax.f32 %v449, 0.0
        %v589 = vmax.f32 %v451, 0.0
        %v590 = vmax.f32 %v453, 0.0
        %v591 = vmax.f32 %v457, 0.0
        %v592 = vmax.f32 %v459, 0.0
        %v593 = vmax.f32 %v461, 0.0
        %v594 = vmax.f32 %v463, 0.0
        %v595 = vmax.f32 %v467, 0.0
        %v596 = vmax.f32 %v469, 0.0
        %v597 = vmax.f32 %v471, 0.0
        %v598 = vmax.f32 %v473, 0.0
        %v599 = vmax.f32 %v477, 0.0
        %v600 = vmax.f32 %v479, 0.0
        %v601 = vmax.f32 %v481, 0.0
        %v602 = vmax.f32 %v483, 0.0
        %v603 = vmax.f32 %v487, 0.0
        %v604 = vmax.f32 %v489, 0.0
        %v605 = vmax.f32 %v491, 0.0
        %v606 = vmax.f32 %v493, 0.0
        %v607 = vmax.f32 %v497, 0.0
        %v608 = vmax.f32 %v499, 0.0
        %v609 = vmax.f32 %v501, 0.0
        %v610 = vmax.f32 %v503, 0.0
        %v611 = vmax.f32 %v507, 0.0
        %v612 = vmax.f32 %v509, 0.0
        %v613 = vmax.f32 %v511, 0.0
        %v614 = vmax.f32 %v513, 0.0
        %v615 = vmax.f32 %v517, 0.0
        %v616 = vmax.f32 %v519, 0.0
        %v617 = vmax.f32 %v521, 0.0
        %v618 = vmax.f32 %v523, 0.0
        %v619 = vmax.f32 %v527, 0.0
        %v620 = vmax.f32 %v529, 0.0
        %v621 = vmax.f32 %v531, 0.0
        %v622 = vmax.f32 %v533, 0.0
        %v623 = vmax.f32 %v537, 0.0
        %v624 = vmax.f32 %v539, 0.0
        %v625 = vmax.f32 %v541, 0.0
        %v626 = vmax.f32 %v543, 0.0
        %v627 = vmax.f32 %v547, 0.0
        %v628 = vmax.f32 %v549, 0.0
        %v629 = vmax.f32 %v551, 0.0
        %v630 = vmax.f32 %v553, 0.0
        %v631 = vmax.f32 %v557, 0.0
        %v632 = vmax.f32 %v559, 0.0
        %v633 = vmax.f32 %v561, 0.0
        %v634 = vmax.f32 %v563, 0.0
        %v635 = vmax.f32 %v567, 0.0
        %v636 = vmax.f32 %v569, 0.0
        %v637 = vmax.f32 %v571, 0.0
        %v638 = vmax.f32 %v573, 0.0
        %v639 = vmax.f32 %v577, 0.0
        %v640 = vmax.f32 %v579, 0.0
        %641 = vst [vmem:[%s239] sm:$0xff] %v583
        %642 = vst [vmem:[%s239 + $0x8] sm:$0xff] %v584
        %643 = vst [vmem:[%s239 + $0x10] sm:$0xff] %v585
        %644 = vst [vmem:[%s239 + $0x18] sm:$0xff] %v586
        %645 = vst [vmem:[%s239 + $0x20] sm:$0xff] %v587
        %646 = vst [vmem:[%s239 + $0x28] sm:$0xff] %v588
        %647 = vst [vmem:[%s239 + $0x30] sm:$0xff] %v589
        %648 = vst [vmem:[%s239 + $0x38] sm:$0xff] %v590
        %649 = vst [vmem:[%s239 + $0x40] sm:$0xff] %v591
        %650 = vst [vmem:[%s239 + $0x48] sm:$0xff] %v592
        %651 = vst [vmem:[%s239 + $0x50] sm:$0xff] %v593
        %652 = vst [vmem:[%s239 + $0x58] sm:$0xff] %v594
        %653 = vst [vmem:[%s239 + $0x60] sm:$0xff] %v595
        %654 = vst [vmem:[%s239 + $0x68] sm:$0xff] %v596
        %655 = vst [vmem:[%s239 + $0x70] sm:$0xff] %v597
        %656 = vst [vmem:[%s239 + $0x78] sm:$0xff] %v598
        %657 = vst [vmem:[%s239 + $0x80] sm:$0xff] %v599
        %658 = vst [vmem:[%s239 + $0x88] sm:$0xff] %v600
        %659 = vst [vmem:[%s239 + $0x90] sm:$0xff] %v601
        %660 = vst [vmem:[%s239 + $0x98] sm:$0xff] %v602
        %661 = vst [vmem:[%s239 + $0xa0] sm:$0xff] %v603
        %662 = vst [vmem:[%s239 + $0xa8] sm:$0xff] %v604
        %663 = vst [vmem:[%s239 + $0xb0] sm:$0xff] %v605
        %664 = vst [vmem:[%s239 + $0xb8] sm:$0xff] %v606
        %665 = vst [vmem:[%s239 + $0xc0] sm:$0xff] %v607
        %666 = vst [vmem:[%s239 + $0xc8] sm:$0xff] %v608
        %667 = vst [vmem:[%s239 + $0xd0] sm:$0xff] %v609
        %668 = vst [vmem:[%s239 + $0xd8] sm:$0xff] %v610
        %669 = vst [vmem:[%s239 + $0xe0] sm:$0xff] %v611
        %670 = vst [vmem:[%s239 + $0xe8] sm:$0xff] %v612
        %671 = vst [vmem:[%s239 + $0xf0] sm:$0xff] %v613
        %672 = vst [vmem:[%s239 + $0xf8] sm:$0xff] %v614
        %673 = vst [vmem:[%s239 + $0x100] sm:$0xff] %v615
        %674 = vst [vmem:[%s239 + $0x108] sm:$0xff] %v616
        %675 = vst [vmem:[%s239 + $0x110] sm:$0xff] %v617
        %676 = vst [vmem:[%s239 + $0x118] sm:$0xff] %v618
        %677 = vst [vmem:[%s239 + $0x120] sm:$0xff] %v619
        %678 = vst [vmem:[%s239 + $0x128] sm:$0xff] %v620
        %679 = vst [vmem:[%s239 + $0x130] sm:$0xff] %v621
        %680 = vst [vmem:[%s239 + $0x138] sm:$0xff] %v622
        %681 = vst [vmem:[%s239 + $0x140] sm:$0xff] %v623
        %682 = vst [vmem:[%s239 + $0x148] sm:$0xff] %v624
        %683 = vst [vmem:[%s239 + $0x150] sm:$0xff] %v625
        %684 = vst [vmem:[%s239 + $0x158] sm:$0xff] %v626
        %685 = vst [vmem:[%s239 + $0x160] sm:$0xff] %v627
        %686 = vst [vmem:[%s239 + $0x168] sm:$0xff] %v628
        %687 = vst [vmem:[%s239 + $0x170] sm:$0xff] %v629
        %688 = vst [vmem:[%s239 + $0x178] sm:$0xff] %v630
        %689 = vst [vmem:[%s239 + $0x180] sm:$0xff] %v631
        %690 = vst [vmem:[%s239 + $0x188] sm:$0xff] %v632
        %691 = vst [vmem:[%s239 + $0x190] sm:$0xff] %v633
        %692 = vst [vmem:[%s239 + $0x198] sm:$0xff] %v634
        %693 = vst [vmem:[%s239 + $0x1a0] sm:$0xff] %v635
        %694 = vst [vmem:[%s239 + $0x1a8] sm:$0xff] %v636
        %695 = vst [vmem:[%s239 + $0x1b0] sm:$0xff] %v637
        %696 = vst [vmem:[%s239 + $0x1b8] sm:$0xff] %v638
        %697 = vst [vmem:[%s239 + $0x1c0] sm:$0xff] %v639
        %698 = vst [vmem:[%s239 + $0x1c8] sm:$0xff] %v640
        %s699 = sand.u32 %s121, 1
        %s700 = scalar_lea.sflag [#allocation4], %s699
        %s701 = sand.u32 %s121, 1
        %s702 = smul.addr %s701, 464
        %s703 = scalar_lea.vmem [#allocation7], %s702
        // Predicated region
        $region41: #{tpu_custom_call.1} parent=31 // pred_check
          %p704 = pneg %p131
        $region42: #{tpu_custom_call.1} parent=31 // pred_check_branch
          %706 = sbr.rel (%p704) target = $region44
        $region43: #{tpu_custom_call.1} parent=31 // pred_region
          %s707 = smul.u32 29, %s25
          %s708 = smul.u32 2, %s26
          %s710 = ssub.s32 7424, 7424
          %711 = vsyncadd %s700, %s710
          %s712 = smul.addr %s707, 4
          %s713 = sadd.s32 %s708, %s712
          %s714 = smul.addr %s713, 128
          %s715 = scalar_lea.hbm %s3, %s714
          %s716 = sshll.u32 %s703, 4
          %s717 = int_to_ptr.vmem [resolvable:$true] %s716
          %722 = dma.vmem_to_hbm [thread:$0]  %s717, 7424, %s715, %s700, 256, 512, 16
        $region44: #{tpu_custom_call.1} parent=31 // pred_fallthru
          _
      $region32: #{tpu_custom_call.1} parent=5 // pred_fallthru
        _
      %p723 = scmp.le.s32.totalorder 2, %s16
      // Predicated region
      $region45: #{tpu_custom_call.1} parent=5 // pred_check
        %p724 = pneg %p723
      $region46: #{tpu_custom_call.1} parent=5 // pred_check_branch
        %726 = sbr.rel (%p724) target = $region48
      $region47: #{tpu_custom_call.1} parent=5 // pred_region
        %s727 = ssub.s32 %s16, 2
        // Predicated region
        $region49: #{tpu_custom_call.1} parent=47 // pred_check
          %p728 = pneg %p137
        $region50: #{tpu_custom_call.1} parent=47 // pred_check_branch
          %730 = sbr.rel (%p728) target = $region52
        $region51: #{tpu_custom_call.1} parent=47 // pred_region
          %s731 = sand.u32 %s122, 1
          %s732 = scalar_lea.sflag [#allocation4], %s731
          %s733 = sand.u32 %s122, 1
          %s734 = smul.addr %s733, 464
          %s735 = scalar_lea.vmem [#allocation7], %s734
          %736 = dma.done %s732, 7424
        $region52: #{tpu_custom_call.1} parent=47 // pred_fallthru
          _
      $region48: #{tpu_custom_call.1} parent=5 // pred_fallthru
        _
    $region6: #{tpu_custom_call.1} parent=1 // loop_footer
      %s20 = sadd.s32 1, %s16
    $region7: #{tpu_custom_call.1} parent=1 // loop_footer_branch
      %15 = sbr.rel target = $region3
    $region8: #{tpu_custom_call.1} parent=1 // loop_exit
      _
    %737 = vsyncpa [#allocation3], 1
    %s738 = scalar_lea.sflag [#allocation3], 1
    %739 = vsyncpa %s738, 1
    %740 = vsyncpa [#allocation6], 1
    %s741 = scalar_lea.sflag [#allocation6], 1
    %742 = vsyncpa %s741, 1
    %743 = vsyncpa [#allocation4], 1
    %s744 = scalar_lea.sflag [#allocation4], 1
    %745 = vsyncpa %s744, 1

</llo_original>
